<compile_context>
chip_gen: v7x
topology: tpu7x:2x2x1
jax: 0.10.0
libtpu: 0.0.40
codegen_flags: <defaults>
</compile_context>

<pallas_src>
import functools
import math

import jax
import jax.numpy as jnp
from jax.experimental import pallas as pl
from jax.experimental.pallas import tpu as pltpu


def make_positional_encoding(max_seq_len, embedding_dim, dtype=jnp.float32):
    """Builds the (max_seq_len, 1, embedding_dim) buffer exactly like the module __init__."""
    position = jnp.arange(max_seq_len, dtype=jnp.float32)[:, None]
    div_term = jnp.exp(
        jnp.arange(0, embedding_dim, 2, dtype=jnp.float32)
        * (-math.log(10000.0) / embedding_dim)
    )
    pe = jnp.zeros((max_seq_len, embedding_dim), dtype=jnp.float32)
    pe = pe.at[:, 0::2].set(jnp.sin(position * div_term))
    pe = pe.at[:, 1::2].set(jnp.cos(position * div_term))
    # unsqueeze(0).transpose(0, 1) -> (max_seq_len, 1, embedding_dim)
    return pe[:, None, :].astype(dtype)


# ---------------------------------------------------------------------------
# Kernels
# ---------------------------------------------------------------------------
def _pos_enc_eval_kernel(x_ref, pe_ref, o_ref):
    """Eval path: broadcast-add positional encoding (dropout is identity)."""
    o_ref[...] = (x_ref[...] + pe_ref[...]).astype(o_ref.dtype)


def _pos_enc_train_prng_kernel(seed_ref, x_ref, pe_ref, o_ref, *,
                               keep_threshold, inv_keep_prob):
    """Train path on TPU: broadcast-add + inverted dropout with the HW PRNG.

    Per-tile seed = seed + program_id so every grid step (on either TC under
    'parallel' semantics) draws an independent, deterministic bit stream.
    """
    pltpu.prng_seed(seed_ref[0] + pl.program_id(0))
    bits = pltpu.bitcast(pltpu.prng_random_bits(x_ref.shape), jnp.uint32)
    keep = bits < jnp.uint32(keep_threshold)      # P(keep) = keep_prob
    y = x_ref[...] + pe_ref[...]
    scaled = y * jnp.asarray(inv_keep_prob, dtype=y.dtype)
    o_ref[...] = jnp.where(keep, scaled, jnp.zeros_like(scaled)).astype(o_ref.dtype)


def _pos_enc_train_mask_kernel(x_ref, pe_ref, keep_ref, o_ref, *, inv_keep_prob):
    """Fallback train path (non-TPU / interpret): precomputed streamed keep-mask.

    Perf is irrelevant here, so the mask stays int8.
    # TODO(synk): if this fallback ever matters for perf, pack the mask to 1 bit/elem.
    """
    y = x_ref[...] + pe_ref[...]
    keep = keep_ref[...] != 0
    scaled = y * jnp.asarray(inv_keep_prob, dtype=y.dtype)
    o_ref[...] = jnp.where(keep, scaled, jnp.zeros_like(scaled)).astype(o_ref.dtype)


# ---------------------------------------------------------------------------
# Wrapper
# ---------------------------------------------------------------------------
def _choose_seq_tile(S, B, D, itemsize, target_bytes=4 << 20):
    """Largest seq tile whose x-block is ~target_bytes.

    4 MiB amortizes the ~0.35 us/step grid overhead on v6e/v7x while keeping the
    double-buffered working set (2 x (x + out) + pe) well under 32 MiB, which is
    safe on v7x's 64 MiB/TC VMEM and — with vmem_limit_bytes raised — on v5e too.
    """
    rows_per_tile = max(1, target_bytes // max(1, B * D * itemsize))
    return int(min(S, rows_per_tile))


def _vmem_limit_bytes(ts, B, D, x_itemsize, pe_itemsize, has_mask):
    x_blk = ts * B * D * x_itemsize
    pe_blk = ts * D * pe_itemsize
    mask_blk = ts * B * D if has_mask else 0
    # 2x double-buffered (x in + out [+ mask]) + 2x pe window + headroom for
    # in-kernel temporaries / compiler scratch.
    need = 2 * (2 * x_blk + mask_blk) + 2 * pe_blk + (2 << 20)
    # Floor 32 MiB (cheap headroom, <= physical on every generation incl. v7x's
    # 64 MiB/TC), cap 48 MiB so a huge tile request can't exceed v7x VMEM.
    return int(min(max(need, 32 << 20), 48 << 20))


def positional_encoding_forward(x, pe, *, dropout_p=0.1, train=False,
                                rng_key=None, seq_tile=None):
    """x: (seq_len, batch, embedding_dim); pe: (max_seq_len, 1, embedding_dim)."""
    S, B, D = x.shape
    assert pe.shape[0] >= S and pe.shape[1] == 1 and pe.shape[2] == D

    # Pre-cast pe once: halves the pe DMA stream for bf16 inputs, no-op for f32.
    pe = pe.astype(x.dtype)

    itemsize = jnp.dtype(x.dtype).itemsize
    TS = int(min(S, seq_tile if seq_tile is not None else _choose_seq_tile(S, B, D, itemsize)))
    grid = (pl.cdiv(S, TS),)
    out_shape = jax.ShapeDtypeStruct((S, B, D), x.dtype)

    train_drop = bool(train) and dropout_p > 0.0
    use_hw_prng = train_drop and jax.devices()[0].platform == "tpu"
    has_mask = train_drop and not use_hw_prng

    compiler_params = pltpu.CompilerParams(
        # Independent seq tiles: lets v7x shard the grid across its 2 TCs.
        dimension_semantics=("parallel",),
        vmem_limit_bytes=_vmem_limit_bytes(
            TS, B, D, itemsize, jnp.dtype(pe.dtype).itemsize, has_mask),
    )

    if not train_drop:
        # Eval (or p == 0): dropout is identity.
        return pl.pallas_call(
            _pos_enc_eval_kernel,
            out_shape=out_shape,
            grid=grid,
            in_specs=[pl.BlockSpec((TS, B, D), lambda s: (s, 0, 0)),
                      pl.BlockSpec((TS, 1, D), lambda s: (s, 0, 0))],  # windows full pe
            out_specs=pl.BlockSpec((TS, B, D), lambda s: (s, 0, 0)),
            compiler_params=compiler_params,
        )(x, pe)

    keep_prob = 1.0 - float(dropout_p)
    inv_keep_prob = 1.0 / keep_prob
    if rng_key is None:
        rng_key = jax.random.PRNGKey(0)

    if use_hw_prng:
        # Scalar-prefetched 32-bit seed derived from the JAX key; no mask traffic.
        seed = jax.random.randint(rng_key, (1,), 0, jnp.iinfo(jnp.int32).max,
                                  dtype=jnp.int32)
        keep_threshold = min(int(keep_prob * (2 ** 32)), 2 ** 32 - 1)
        kernel = functools.partial(_pos_enc_train_prng_kernel,
                                   keep_threshold=keep_threshold,
                                   inv_keep_prob=inv_keep_prob)
        grid_spec = pltpu.PrefetchScalarGridSpec(
            num_scalar_prefetch=1,
            grid=grid,
            in_specs=[pl.BlockSpec((TS, B, D), lambda s, seed_ref: (s, 0, 0)),
                      pl.BlockSpec((TS, 1, D), lambda s, seed_ref: (s, 0, 0))],
            out_specs=pl.BlockSpec((TS, B, D), lambda s, seed_ref: (s, 0, 0)),
        )
        return pl.pallas_call(
            kernel,
            out_shape=out_shape,
            grid_spec=grid_spec,
            compiler_params=compiler_params,
        )(seed, x, pe)

    # Non-TPU / interpret fallback: streamed int8 keep-mask (bit-exact w.r.t. the key).
    keep_mask = jax.random.bernoulli(rng_key, keep_prob, (S, B, D)).astype(jnp.int8)
    kernel = functools.partial(_pos_enc_train_mask_kernel, inv_keep_prob=inv_keep_prob)
    return pl.pallas_call(
        kernel,
        out_shape=out_shape,
        grid=grid,
        in_specs=[pl.BlockSpec((TS, B, D), lambda s: (s, 0, 0)),
                  pl.BlockSpec((TS, 1, D), lambda s: (s, 0, 0)),
                  pl.BlockSpec((TS, B, D), lambda s: (s, 0, 0))],
        out_specs=pl.BlockSpec((TS, B, D), lambda s: (s, 0, 0)),
        compiler_params=compiler_params,
    )(x, pe, keep_mask)


# ---------------------------------------------------------------------------
# Self-test
# ---------------------------------------------------------------------------
if __name__ == "__main__":
    seq_len, batch, embedding_dim = 8, 2, 32
    max_seq_len, dropout_p = 100, 0.1

    key = jax.random.PRNGKey(0)
    x_key, drop_key, x2_key = jax.random.split(key, 3)
    x = jax.random.normal(x_key, (seq_len, batch, embedding_dim), dtype=jnp.float32)
    pe = make_positional_encoding(max_seq_len, embedding_dim)

    # ---- Eval mode (dropout is identity): exact check against the reference math.
    out_eval = jax.block_until_ready(
        positional_encoding_forward(x, pe, dropout_p=dropout_p, train=False))
    ref = x + pe[:seq_len]
    assert out_eval.shape == (seq_len, batch, embedding_dim)
    assert jnp.allclose(out_eval, ref, atol=1e-6, rtol=1e-6)

    # ---- Eval mode with S not divisible by the seq tile: confirms edge-block
    #      padding is benign (no garbage rows leak into valid output).
    seq_len2 = 12
    x2 = jax.random.normal(x2_key, (seq_len2, batch, embedding_dim), dtype=jnp.float32)
    out_eval2 = jax.block_until_ready(
        positional_encoding_forward(x2, pe, dropout_p=dropout_p, train=False, seq_tile=8))
    assert jnp.allclose(out_eval2, x2 + pe[:seq_len2], atol=1e-6, rtol=1e-6)

    # ---- Train mode: in-kernel HW-PRNG dropout on TPU.  The HW bit stream is not
    #      reproducible from the JAX key, so verify structurally: every element is
    #      either exactly 0 (dropped) or ref/keep_prob (kept), and the empirical
    #      drop fraction is plausible for p = 0.1.
    keep_prob = 1.0 - dropout_p
    out_train = jax.block_until_ready(
        positional_encoding_forward(x, pe, dropout_p=dropout_p, train=True,
                                    rng_key=drop_key))
    assert out_train.shape == (seq_len, batch, embedding_dim)
    is_zero = out_train == 0.0
    matches = jnp.isclose(out_train, ref / keep_prob, atol=1e-5, rtol=1e-5)
    assert bool(jnp.all(is_zero | matches))
    drop_frac = float(jnp.mean(is_zero.astype(jnp.float32)))
    assert drop_frac < 0.5, f"implausible drop fraction {drop_frac} for p={dropout_p}"

    print("KERNEL_OK")
</pallas_src>

<mosaic_0001>
module attributes {stable_mosaic.version = 11 : i64} {
  func.func @_pos_enc_eval_kernel(%arg0: i32, %arg1: memref<8x2x32xf32, #tpu.memory_space<vmem>>, %arg2: memref<8x1x32xf32, #tpu.memory_space<vmem>>, %arg3: memref<8x2x32xf32, #tpu.memory_space<vmem>>) attributes {dimension_semantics = [#tpu.dimension_semantics<parallel>], iteration_bounds = array<i64: 1>, scalar_prefetch = 0 : i64, scratch_operands = 0 : i64, tpu.core_type = #tpu.core_type<tc>, window_params = [{transform_indices = @transform_0, window_bounds = array<i64: 8, 2, 32>}, {transform_indices = @transform_1, window_bounds = array<i64: 8, 1, 32>}, {transform_indices = @transform_2, window_bounds = array<i64: 8, 2, 32>}]} {
    %c0 = arith.constant 0 : index
    %c0_0 = arith.constant 0 : index
    %c0_1 = arith.constant 0 : index
    %0 = vector.load %arg1[%c0, %c0_0, %c0_1] : memref<8x2x32xf32, #tpu.memory_space<vmem>>, vector<8x2x32xf32>
    %c0_2 = arith.constant 0 : index
    %c0_3 = arith.constant 0 : index
    %c0_4 = arith.constant 0 : index
    %1 = vector.load %arg2[%c0_2, %c0_3, %c0_4] : memref<8x1x32xf32, #tpu.memory_space<vmem>>, vector<8x1x32xf32>
    %2 = vector.broadcast %1 : vector<8x1x32xf32> to vector<8x2x32xf32>
    %3 = arith.addf %0, %2 : vector<8x2x32xf32>
    %c0_5 = arith.constant 0 : index
    %c0_6 = arith.constant 0 : index
    %c0_7 = arith.constant 0 : index
    %4 = vector.load %arg3[%c0_5, %c0_6, %c0_7] : memref<8x2x32xf32, #tpu.memory_space<vmem>>, vector<8x2x32xf32>
    tpu.vector_store %arg3[%c0_5, %c0_6, %c0_7], %3 {strides = array<i32>} : memref<8x2x32xf32, #tpu.memory_space<vmem>>, vector<8x2x32xf32>,
    return
  }
  func.func @transform_0(%arg0: i32) -> (i32, i32, i32) {
    %c0_i32 = arith.constant 0 : i32
    %c0_i32_0 = arith.constant 0 : i32
    %c0_i32_1 = arith.constant 0 : i32
    return %arg0, %c0_i32, %c0_i32_0 : i32, i32, i32
  }
  func.func @transform_1(%arg0: i32) -> (i32, i32, i32) {
    %c0_i32 = arith.constant 0 : i32
    %c0_i32_0 = arith.constant 0 : i32
    %c0_i32_1 = arith.constant 0 : i32
    return %arg0, %c0_i32, %c0_i32_0 : i32, i32, i32
  }
  func.func @transform_2(%arg0: i32) -> (i32, i32, i32) {
    %c0_i32 = arith.constant 0 : i32
    %c0_i32_0 = arith.constant 0 : i32
    %c0_i32_1 = arith.constant 0 : i32
    return %arg0, %c0_i32, %c0_i32_0 : i32, i32, i32
  }
}

</mosaic_0001>

<llo_original>
// kernel: tpu_custom_call.1
$region0: #{tpu_custom_call.1}
  #allocation0 [shape = 'u32[]', space=smem, size = 0x4, offset = 0x4, fixed_abs, tag = 'smem constant byte address 0x4 - core index']
  #allocation1 [shape = 'u32[144,128]{1,0:T(1,128)}', space=vmem, size = 0x12000, scoped, tag = 'internal scratch']
  %s0 = inlined_call_operand.vmem [shape: f32[8,2,32], index: 0, kind: input, shape index: {}]
  %s1 = inlined_call_operand.vmem [shape: f32[100,1,32], index: 1, kind: input, shape index: {}]
  %s2 = inlined_call_operand.hbm [shape: f32[8,2,32], index: 2, kind: output, shape index: {}]
  %s3 = sld [smem:[#allocation0]]
  $region18: #{tpu_custom_call.1} parent=0
    _
  %s5 = ssub.s32 1, %s3
  %s6 = scalar_select 0, %s5, %s3
  $region1: #{tpu_custom_call.1} parent=0
    #allocation2 [shape = 'u8[8192]{0}', space=vmem, size = 0x2000, scoped, tag = 'output window, operand 0, single buffered']
    #allocation3 [shape = 's32[1]{0}', space=sflag, size = 0x4, scoped, tag = 'scoped memory for tpu_custom_call.1']
    %7 = vsyncpa [#allocation3], 0
    // Predicated region
    $region2: #{tpu_custom_call.1} parent=1 // pred_check
      _
    $region3: #{tpu_custom_call.1} parent=1 // pred_check_branch
      %9 = sbr.rel (0) target = $region5
    $region4: #{tpu_custom_call.1} parent=1 // pred_region
      _
    $region5: #{tpu_custom_call.1} parent=1 // pred_fallthru
      _
    // Predicated region
    $region6: #{tpu_custom_call.1} parent=1 // pred_check
      _
    $region7: #{tpu_custom_call.1} parent=1 // pred_check_branch
      %11 = sbr.rel (0) target = $region9
    $region8: #{tpu_custom_call.1} parent=1 // pred_region
      _
    $region9: #{tpu_custom_call.1} parent=1 // pred_fallthru
      _
    %v12 = vld [vmem:[%s0] sm:$0x3]
    %v13 = vld [vmem:[%s0 + $0x2] sm:$0x3]
    %v14 = vld [vmem:[%s0 + $0x4] sm:$0x3]
    %v15 = vld [vmem:[%s0 + $0x6] sm:$0x3]
    %v16 = vld [vmem:[%s0 + $0x8] sm:$0x3]
    %v17 = vld [vmem:[%s0 + $0xa] sm:$0x3]
    %v18 = vld [vmem:[%s0 + $0xc] sm:$0x3]
    %v19 = vld [vmem:[%s0 + $0xe] sm:$0x3]
    %v20 = vld [vmem:[%s1] sm:$0x1]
    %v21 = vld [vmem:[%s1 + $0x1] sm:$0x1]
    %v22 = vld [vmem:[%s1 + $0x2] sm:$0x1]
    %v23 = vld [vmem:[%s1 + $0x3] sm:$0x1]
    %v24 = vld [vmem:[%s1 + $0x4] sm:$0x1]
    %v25 = vld [vmem:[%s1 + $0x5] sm:$0x1]
    %v26 = vld [vmem:[%s1 + $0x6] sm:$0x1]
    %v27 = vld [vmem:[%s1 + $0x7] sm:$0x1]
    %v36 = vlaneseq
    %v37 = vshrl.u32 %v36, 7
    %v38 = vsub.s32 0, %v37
    %v39 = vrot.slane %v20, %v38
    %v40 = vlaneseq
    %v41 = vshrl.u32 %v40, 7
    %v42 = vsub.s32 0, %v41
    %v43 = vrot.slane %v21, %v42
    %v44 = vlaneseq
    %v45 = vshrl.u32 %v44, 7
    %v46 = vsub.s32 0, %v45
    %v47 = vrot.slane %v22, %v46
    %v48 = vlaneseq
    %v49 = vshrl.u32 %v48, 7
    %v50 = vsub.s32 0, %v49
    %v51 = vrot.slane %v23, %v50
    %v52 = vlaneseq
    %v53 = vshrl.u32 %v52, 7
    %v54 = vsub.s32 0, %v53
    %v55 = vrot.slane %v24, %v54
    %v56 = vlaneseq
    %v57 = vshrl.u32 %v56, 7
    %v58 = vsub.s32 0, %v57
    %v59 = vrot.slane %v25, %v58
    %v60 = vlaneseq
    %v61 = vshrl.u32 %v60, 7
    %v62 = vsub.s32 0, %v61
    %v63 = vrot.slane %v26, %v62
    %v64 = vlaneseq
    %v65 = vshrl.u32 %v64, 7
    %v66 = vsub.s32 0, %v65
    %v67 = vrot.slane %v27, %v66
    %v76 = vadd.f32 %v12, %v39
    %v77 = vadd.f32 %v13, %v43
    %v78 = vadd.f32 %v14, %v47
    %v79 = vadd.f32 %v15, %v51
    %v80 = vadd.f32 %v16, %v55
    %v81 = vadd.f32 %v17, %v59
    %v82 = vadd.f32 %v18, %v63
    %v83 = vadd.f32 %v19, %v67
    %vm84 = vcmask 254976
    %85 = vst.msk [vmem:[#allocation2] sm:$0x3] %vm84, %v76
    %86 = vst.msk [vmem:[#allocation2 + $0x2] sm:$0x3] %vm84, %v77
    %87 = vst.msk [vmem:[#allocation2 + $0x4] sm:$0x3] %vm84, %v78
    %88 = vst.msk [vmem:[#allocation2 + $0x6] sm:$0x3] %vm84, %v79
    %89 = vst.msk [vmem:[#allocation2 + $0x8] sm:$0x3] %vm84, %v80
    %90 = vst.msk [vmem:[#allocation2 + $0xa] sm:$0x3] %vm84, %v81
    %91 = vst.msk [vmem:[#allocation2 + $0xc] sm:$0x3] %vm84, %v82
    %92 = vst.msk [vmem:[#allocation2 + $0xe] sm:$0x3] %vm84, %v83
    // Predicated region
    $region10: #{tpu_custom_call.1} parent=1 // pred_check
      _
    $region11: #{tpu_custom_call.1} parent=1 // pred_check_branch
      %94 = sbr.rel (0) target = $region13
    $region12: #{tpu_custom_call.1} parent=1 // pred_region
      %s96 = ssub.s32 256, 256
      %97 = vsyncadd [#allocation3], %s96
      %s98 = sshll.u32 [#allocation2], 4
      %s99 = int_to_ptr.vmem [resolvable:$true] %s98
      %104 = dma.vmem_to_hbm [thread:$0]  %s99, 256, %s2, [#allocation3], 32, 32, 2
    $region13: #{tpu_custom_call.1} parent=1 // pred_fallthru
      _
    // Predicated region
    $region14: #{tpu_custom_call.1} parent=1 // pred_check
      _
    $region15: #{tpu_custom_call.1} parent=1 // pred_check_branch
      %106 = sbr.rel (0) target = $region17
    $region16: #{tpu_custom_call.1} parent=1 // pred_region
      %107 = dma.done [#allocation3], 256
    $region17: #{tpu_custom_call.1} parent=1 // pred_fallthru
      _
    %108 = vsyncpa [#allocation3], 1

</llo_original>
